<compile_context>
chip_gen: v5e
topology: v5e:2x2
jax: 0.10.0
libtpu: 0.0.40
codegen_flags: <defaults>
</compile_context>

<pallas_src>
import functools

import jax
import jax.numpy as jnp
from jax.experimental import pallas as pl
from jax.experimental.pallas import tpu as pltpu


def _round_up(n, m):
    return ((n + m - 1) // m) * m


# ----------------------------------------------------------------------------
# Kernel
# ----------------------------------------------------------------------------
def _actor_critic_kernel(x_ref, w1_ref, b1_ref, w2_ref, b2_ref,
                         wh_ref, bh_ref, out_ref):
    """One batch tile of the fused actor-critic MLP.

    x_ref:  [tm, in_dim]            (f32; cast to weight dtype in-kernel)
    w1_ref: [in_dim, H_p]           w2_ref: [H_p, H_p]   wh_ref: [H_p, Out_p]
    b*_ref: [1, D] f32 biases.
    out_ref:[tm, Out_p] f32 — columns [0, A) are logits, column A is value.
    """
    x = x_ref[...].astype(w1_ref.dtype)

    # fc1 + ReLU (MXU accumulates in f32, epilogue in f32)
    h1 = jnp.dot(x, w1_ref[...], preferred_element_type=jnp.float32)
    h1 = jnp.maximum(h1 + b1_ref[...], 0.0)
    h1 = h1.astype(w2_ref.dtype)           # no-op for f32 weights, cast for bf16

    # fc2 + ReLU
    h2 = jnp.dot(h1, w2_ref[...], preferred_element_type=jnp.float32)
    h2 = jnp.maximum(h2 + b2_ref[...], 0.0)
    h2 = h2.astype(wh_ref.dtype)

    # fused policy + value head -> single lane-dense output slab
    out = jnp.dot(h2, wh_ref[...], preferred_element_type=jnp.float32)
    out_ref[...] = out + bh_ref[...]


# ----------------------------------------------------------------------------
# Parameter packing
# ----------------------------------------------------------------------------
def pack_params(params, compute_dtype=jnp.bfloat16):
    """Pad hidden / head dims to 128 lanes, fuse the two heads.

    The input-feature (K) dim of W1 is left unpadded so the x tile can be fed
    to the kernel without a wrapper-side pad.  Zero padding of hidden / head
    columns is exact through bias+ReLU.  Returns (packed, dims) with
    dims = (H_p, Out_p, action_dim).
    """
    w1, b1, w2, b2, wp, bp, wv, bv = params
    in_dim, hidden_dim = w1.shape
    action_dim = wp.shape[1]

    h_p = _round_up(hidden_dim, 128)
    out_p = _round_up(action_dim + 1, 128)

    w1p = jnp.zeros((in_dim, h_p), compute_dtype).at[:, :hidden_dim].set(
        w1.astype(compute_dtype))
    b1p = jnp.zeros((1, h_p), jnp.float32).at[:, :hidden_dim].set(b1)

    w2p = jnp.zeros((h_p, h_p), compute_dtype).at[:hidden_dim, :hidden_dim].set(
        w2.astype(compute_dtype))
    b2p = jnp.zeros((1, h_p), jnp.float32).at[:, :hidden_dim].set(b2)

    wh = jnp.concatenate([wp, wv], axis=1)          # [H, A+1]
    bh = jnp.concatenate([bp, bv], axis=1)          # [1, A+1]
    whp = jnp.zeros((h_p, out_p), compute_dtype).at[:hidden_dim, :action_dim + 1].set(
        wh.astype(compute_dtype))
    bhp = jnp.zeros((1, out_p), jnp.float32).at[:, :action_dim + 1].set(bh)

    return (w1p, b1p, w2p, b2p, whp, bhp), (h_p, out_p, action_dim)


# ----------------------------------------------------------------------------
# Forward wrapper
# ----------------------------------------------------------------------------
_MIN_SPLIT_ROWS = 512   # force >= 2 grid steps at this batch (v7x has 2 TCs)


def _choose_batch_tile(batch, tile_m):
    """Pick a (tm, n_tiles) that is 8-aligned and minimizes padded rows."""
    tile_m = max(8, _round_up(int(tile_m), 8))
    n_tiles = max(1, -(-batch // tile_m))
    if batch >= _MIN_SPLIT_ROWS:
        n_tiles = max(n_tiles, 2)
    tm = _round_up(-(-batch // n_tiles), 8)
    return tm, n_tiles


@functools.partial(jax.jit, static_argnames=("dims", "tile_m"))
def actor_critic_forward(x, packed, dims, tile_m=1024):
    """Fused MLP forward. Returns (logits [B, A], value [B])."""
    w1p, b1p, w2p, b2p, whp, bhp = packed
    h_p, out_p, action_dim = dims

    B, in_dim = x.shape
    tm, n_tiles = _choose_batch_tile(B, tile_m)
    b_p = tm * n_tiles

    # Only the batch axis is (minimally) padded; the feature axis is untouched.
    x_in = x if b_p == B else jnp.pad(x, ((0, b_p - B), (0, 0)))

    # Weights / biases: constant block index -> VMEM-resident across the grid.
    const = lambda arr: pl.BlockSpec(arr.shape, lambda i: (0, 0))

    weight_bytes = sum(int(a.size) * a.dtype.itemsize
                       for a in (w1p, b1p, w2p, b2p, whp, bhp))
    cost = pl.CostEstimate(
        flops=int(2 * b_p * (in_dim * h_p + h_p * h_p + h_p * out_p)),
        transcendentals=0,
        bytes_accessed=int(b_p * in_dim * x_in.dtype.itemsize
                           + weight_bytes
                           + b_p * out_p * 4),
    )

    out = pl.pallas_call(
        _actor_critic_kernel,
        out_shape=jax.ShapeDtypeStruct((b_p, out_p), jnp.float32),
        grid=(n_tiles,),
        in_specs=[pl.BlockSpec((tm, in_dim), lambda i: (i, 0)),
                  const(w1p), const(b1p), const(w2p), const(b2p),
                  const(whp), const(bhp)],
        out_specs=pl.BlockSpec((tm, out_p), lambda i: (i, 0)),
        compiler_params=pltpu.CompilerParams(
            dimension_semantics=("parallel",),
            vmem_limit_bytes=64 * 1024 * 1024),
        cost_estimate=cost,
    )(x_in, w1p, b1p, w2p, b2p, whp, bhp)

    # Single read of the padded slab -> (B, A+1), then split the small array.
    head = jax.lax.slice(out, (0, 0), (B, action_dim + 1))
    logits = head[:, :action_dim]
    value = head[:, action_dim]
    return logits, value


# ----------------------------------------------------------------------------
# Init + pure-JAX reference
# ----------------------------------------------------------------------------
def init_params(key, input_dim, hidden_dim, action_dim):
    """Deterministic init mimicking nn.Linear's U(-1/sqrt(fan_in), 1/sqrt(fan_in))."""
    keys = jax.random.split(key, 8)

    def linear(kw, kb, fan_in, fan_out):
        bound = 1.0 / jnp.sqrt(jnp.float32(fan_in))
        w = jax.random.uniform(kw, (fan_in, fan_out), jnp.float32, -bound, bound)
        b = jax.random.uniform(kb, (1, fan_out), jnp.float32, -bound, bound)
        return w, b

    w1, b1 = linear(keys[0], keys[1], input_dim, hidden_dim)
    w2, b2 = linear(keys[2], keys[3], hidden_dim, hidden_dim)
    wp, bp = linear(keys[4], keys[5], hidden_dim, action_dim)
    wv, bv = linear(keys[6], keys[7], hidden_dim, 1)
    return (w1, b1, w2, b2, wp, bp, wv, bv)


def reference_forward(x, params):
    """Plain-JAX reference matching the PyTorch forward."""
    w1, b1, w2, b2, wp, bp, wv, bv = params
    h1 = jnp.maximum(x @ w1 + b1, 0.0)
    h2 = jnp.maximum(h1 @ w2 + b2, 0.0)
    logits = h2 @ wp + bp
    value = (h2 @ wv + bv).squeeze(-1)
    return logits, value


if __name__ == "__main__":
    key = jax.random.PRNGKey(0)
    k_params, k_x, k_xbig, k_xodd = jax.random.split(key, 4)

    batch = 8
    input_dim = 16
    hidden_dim = 32
    action_dim = 4

    params = init_params(k_params, input_dim, hidden_dim, action_dim)
    x = jax.random.normal(k_x, (batch, input_dim), dtype=jnp.float32)
    ref_logits, ref_value = reference_forward(x, params)

    # --- f32 path (exact match vs reference) ---
    packed_f32, dims = pack_params(params, compute_dtype=jnp.float32)
    logits, value = actor_critic_forward(x, packed_f32, dims)
    jax.block_until_ready((logits, value))
    assert logits.shape == (batch, action_dim)
    assert value.shape == (batch,)
    assert jnp.allclose(logits, ref_logits, atol=1e-5, rtol=1e-5)
    assert jnp.allclose(value, ref_value, atol=1e-5, rtol=1e-5)

    # --- B=512 exercises the >=2-grid-step rule (2 tiles of 256) ---
    big_b = 512
    x_big = jax.random.normal(k_xbig, (big_b, input_dim), dtype=jnp.float32)
    logits_b, value_b = actor_critic_forward(x_big, packed_f32, dims)
    jax.block_until_ready((logits_b, value_b))
    ref_logits_b, ref_value_b = reference_forward(x_big, params)
    assert jnp.allclose(logits_b, ref_logits_b, atol=1e-5, rtol=1e-5)
    assert jnp.allclose(value_b, ref_value_b, atol=1e-5, rtol=1e-5)

    # --- awkward batch (B=300 -> tm=304, 4 padded rows) ---
    odd_b = 300
    x_odd = jax.random.normal(k_xodd, (odd_b, input_dim), dtype=jnp.float32)
    logits_o, value_o = actor_critic_forward(x_odd, packed_f32, dims)
    jax.block_until_ready((logits_o, value_o))
    ref_logits_o, ref_value_o = reference_forward(x_odd, params)
    assert jnp.allclose(logits_o, ref_logits_o, atol=1e-5, rtol=1e-5)
    assert jnp.allclose(value_o, ref_value_o, atol=1e-5, rtol=1e-5)

    # --- default bf16 weights, f32 accumulation + f32 epilogue ---
    packed_bf16, dims_bf16 = pack_params(params)   # compute_dtype defaults to bf16
    logits_h, value_h = actor_critic_forward(x, packed_bf16, dims_bf16)
    jax.block_until_ready((logits_h, value_h))
    assert jnp.allclose(logits_h, ref_logits, atol=5e-2, rtol=5e-2)
    assert jnp.allclose(value_h, ref_value, atol=5e-2, rtol=5e-2)

    print("KERNEL_OK")
</pallas_src>

<mosaic_0001>
module attributes {stable_mosaic.version = 11 : i64} {
  func.func @_actor_critic_kernel(%arg0: i32, %arg1: memref<8x16xf32, #tpu.memory_space<vmem>>, %arg2: memref<16x128xf32, #tpu.memory_space<vmem>>, %arg3: memref<1x128xf32, #tpu.memory_space<vmem>>, %arg4: memref<128x128xf32, #tpu.memory_space<vmem>>, %arg5: memref<1x128xf32, #tpu.memory_space<vmem>>, %arg6: memref<128x128xf32, #tpu.memory_space<vmem>>, %arg7: memref<1x128xf32, #tpu.memory_space<vmem>>, %arg8: memref<8x128xf32, #tpu.memory_space<vmem>>) attributes {dimension_semantics = [#tpu.dimension_semantics<parallel>], iteration_bounds = array<i64: 1>, scalar_prefetch = 0 : i64, scratch_operands = 0 : i64, tpu.core_type = #tpu.core_type<tc>, window_params = [{transform_indices = @transform_0, window_bounds = array<i64: 8, 16>}, {pipeline_mode = #tpu.pipeline_mode<synchronous>, transform_indices = @transform_1, window_bounds = array<i64: 16, 128>}, {pipeline_mode = #tpu.pipeline_mode<synchronous>, transform_indices = @transform_2, window_bounds = array<i64: 1, 128>}, {pipeline_mode = #tpu.pipeline_mode<synchronous>, transform_indices = @transform_3, window_bounds = array<i64: 128, 128>}, {pipeline_mode = #tpu.pipeline_mode<synchronous>, transform_indices = @transform_4, window_bounds = array<i64: 1, 128>}, {pipeline_mode = #tpu.pipeline_mode<synchronous>, transform_indices = @transform_5, window_bounds = array<i64: 128, 128>}, {pipeline_mode = #tpu.pipeline_mode<synchronous>, transform_indices = @transform_6, window_bounds = array<i64: 1, 128>}, {transform_indices = @transform_7, window_bounds = array<i64: 8, 128>}]} {
    %c0 = arith.constant 0 : index
    %c0_0 = arith.constant 0 : index
    %0 = vector.load %arg1[%c0, %c0_0] : memref<8x16xf32, #tpu.memory_space<vmem>>, vector<8x16xf32>
    %c0_1 = arith.constant 0 : index
    %c0_2 = arith.constant 0 : index
    %1 = vector.load %arg2[%c0_1, %c0_2] : memref<16x128xf32, #tpu.memory_space<vmem>>, vector<16x128xf32>
    %cst = arith.constant dense<0.000000e+00> : vector<8x128xf32>
    %2 = tpu.matmul %0, %1, %cst {dimension_numbers = #tpu.dot_dimension_numbers<[1], [0], [0], [1], [0, 0, 1, 1], [], []>} : vector<8x16xf32>, vector<16x128xf32>, vector<8x128xf32> -> vector<8x128xf32>
    %c0_3 = arith.constant 0 : index
    %c0_4 = arith.constant 0 : index
    %3 = vector.load %arg3[%c0_3, %c0_4] : memref<1x128xf32, #tpu.memory_space<vmem>>, vector<1x128xf32>
    %4 = vector.broadcast %3 : vector<1x128xf32> to vector<8x128xf32>
    %5 = arith.addf %2, %4 : vector<8x128xf32>
    %cst_5 = arith.constant 0.000000e+00 : f32
    %6 = vector.broadcast %cst_5 : f32 to vector<8x128xf32>
    %7 = arith.maximumf %5, %6 : vector<8x128xf32>
    %c0_6 = arith.constant 0 : index
    %c0_7 = arith.constant 0 : index
    %8 = vector.load %arg4[%c0_6, %c0_7] : memref<128x128xf32, #tpu.memory_space<vmem>>, vector<128x128xf32>
    %cst_8 = arith.constant dense<0.000000e+00> : vector<8x128xf32>
    %9 = tpu.matmul %7, %8, %cst_8 {dimension_numbers = #tpu.dot_dimension_numbers<[1], [0], [0], [1], [0, 0, 1, 1], [], []>} : vector<8x128xf32>, vector<128x128xf32>, vector<8x128xf32> -> vector<8x128xf32>
    %c0_9 = arith.constant 0 : index
    %c0_10 = arith.constant 0 : index
    %10 = vector.load %arg5[%c0_9, %c0_10] : memref<1x128xf32, #tpu.memory_space<vmem>>, vector<1x128xf32>
    %11 = vector.broadcast %10 : vector<1x128xf32> to vector<8x128xf32>
    %12 = arith.addf %9, %11 : vector<8x128xf32>
    %cst_11 = arith.constant 0.000000e+00 : f32
    %13 = vector.broadcast %cst_11 : f32 to vector<8x128xf32>
    %14 = arith.maximumf %12, %13 : vector<8x128xf32>
    %c0_12 = arith.constant 0 : index
    %c0_13 = arith.constant 0 : index
    %15 = vector.load %arg6[%c0_12, %c0_13] : memref<128x128xf32, #tpu.memory_space<vmem>>, vector<128x128xf32>
    %cst_14 = arith.constant dense<0.000000e+00> : vector<8x128xf32>
    %16 = tpu.matmul %14, %15, %cst_14 {dimension_numbers = #tpu.dot_dimension_numbers<[1], [0], [0], [1], [0, 0, 1, 1], [], []>} : vector<8x128xf32>, vector<128x128xf32>, vector<8x128xf32> -> vector<8x128xf32>
    %c0_15 = arith.constant 0 : index
    %c0_16 = arith.constant 0 : index
    %17 = vector.load %arg7[%c0_15, %c0_16] : memref<1x128xf32, #tpu.memory_space<vmem>>, vector<1x128xf32>
    %18 = vector.broadcast %17 : vector<1x128xf32> to vector<8x128xf32>
    %19 = arith.addf %16, %18 : vector<8x128xf32>
    %c0_17 = arith.constant 0 : index
    %c0_18 = arith.constant 0 : index
    %20 = vector.load %arg8[%c0_17, %c0_18] : memref<8x128xf32, #tpu.memory_space<vmem>>, vector<8x128xf32>
    tpu.vector_store %arg8[%c0_17, %c0_18], %19 {strides = array<i32>} : memref<8x128xf32, #tpu.memory_space<vmem>>, vector<8x128xf32>,
    return
  }
  func.func @transform_0(%arg0: i32) -> (i32, i32) {
    %c0_i32 = arith.constant 0 : i32
    %c0_i32_0 = arith.constant 0 : i32
    return %arg0, %c0_i32 : i32, i32
  }
  func.func @transform_1(%arg0: i32) -> (i32, i32) {
    %c0_i32 = arith.constant 0 : i32
    %c0_i32_0 = arith.constant 0 : i32
    %c0_i32_1 = arith.constant 0 : i32
    return %c0_i32, %c0_i32_0 : i32, i32
  }
  func.func @transform_2(%arg0: i32) -> (i32, i32) {
    %c0_i32 = arith.constant 0 : i32
    %c0_i32_0 = arith.constant 0 : i32
    %c0_i32_1 = arith.constant 0 : i32
    return %c0_i32, %c0_i32_0 : i32, i32
  }
  func.func @transform_3(%arg0: i32) -> (i32, i32) {
    %c0_i32 = arith.constant 0 : i32
    %c0_i32_0 = arith.constant 0 : i32
    %c0_i32_1 = arith.constant 0 : i32
    return %c0_i32, %c0_i32_0 : i32, i32
  }
  func.func @transform_4(%arg0: i32) -> (i32, i32) {
    %c0_i32 = arith.constant 0 : i32
    %c0_i32_0 = arith.constant 0 : i32
    %c0_i32_1 = arith.constant 0 : i32
    return %c0_i32, %c0_i32_0 : i32, i32
  }
  func.func @transform_5(%arg0: i32) -> (i32, i32) {
    %c0_i32 = arith.constant 0 : i32
    %c0_i32_0 = arith.constant 0 : i32
    %c0_i32_1 = arith.constant 0 : i32
    return %c0_i32, %c0_i32_0 : i32, i32
  }
  func.func @transform_6(%arg0: i32) -> (i32, i32) {
    %c0_i32 = arith.constant 0 : i32
    %c0_i32_0 = arith.constant 0 : i32
    %c0_i32_1 = arith.constant 0 : i32
    return %c0_i32, %c0_i32_0 : i32, i32
  }
  func.func @transform_7(%arg0: i32) -> (i32, i32) {
    %c0_i32 = arith.constant 0 : i32
    %c0_i32_0 = arith.constant 0 : i32
    return %arg0, %c0_i32 : i32, i32
  }
}

</mosaic_0001>

<llo_original>
// kernel: actor_critic_forward.1
$region0: #{actor_critic_forward.1}
  #allocation0 [shape = 'u32[]', space=smem, size = 0x4, offset = 0x4, fixed_abs, tag = 'smem constant byte address 0x4 - core index']
  #allocation1 [shape = 'u32[72,128]{1,0:T(1,128)}', space=vmem, size = 0x9000, scoped, tag = 'internal scratch']
  %s0 = inlined_call_operand.hbm [shape: f32[8,16], index: 0, kind: input, shape index: {}]
  %s1 = inlined_call_operand.hbm [shape: f32[16,128], index: 1, kind: input, shape index: {}]
  %s2 = inlined_call_operand.vmem [shape: f32[1,128], index: 2, kind: input, shape index: {}]
  %s3 = inlined_call_operand.hbm [shape: f32[128,128], index: 3, kind: input, shape index: {}]
  %s4 = inlined_call_operand.vmem [shape: f32[1,128], index: 4, kind: input, shape index: {}]
  %s5 = inlined_call_operand.hbm [shape: f32[128,128], index: 5, kind: input, shape index: {}]
  %s6 = inlined_call_operand.vmem [shape: f32[1,128], index: 6, kind: input, shape index: {}]
  %s7 = inlined_call_operand.vmem [shape: f32[8,128], index: 7, kind: output, shape index: {}]
  %s8 = sld [smem:[#allocation0]]
  $region54: #{actor_critic_forward.1} parent=0
    _
  %s10 = ssub.s32 1, %s8
  %s11 = scalar_select 0, %s10, %s8
  $region1: #{actor_critic_forward.1} parent=0
    #allocation2 [shape = 'u8[4096]{0}', space=vmem, size = 0x1000, scoped, tag = 'input window, operand 0, single buffered']
    #allocation3 [shape = 's32[1]{0}', space=sflag, size = 0x4, scoped, tag = 'scoped memory for actor_critic_forward.1']
    #allocation4 [shape = 'u8[8192]{0}', space=vmem, size = 0x2000, scoped, tag = 'input window, operand 1, single buffered']
    #allocation5 [shape = 's32[1]{0}', space=sflag, size = 0x4, scoped, tag = 'scoped memory for actor_critic_forward.1']
    #allocation6 [shape = 'u8[65536]{0}', space=vmem, size = 0x10000, scoped, tag = 'input window, operand 3, single buffered']
    #allocation7 [shape = 'u8[65536]{0}', space=vmem, size = 0x10000, scoped, tag = 'input window, operand 5, single buffered']
    #allocation8 [shape = 's32[1]{0}', space=sflag, size = 0x4, scoped, tag = 'scoped memory for actor_critic_forward.1']
    %12 = vsyncpa [#allocation3], 0
    %13 = vsyncpa [#allocation5], 0
    %14 = vsyncpa [#allocation8], 0
    // Predicated region
    $region2: #{actor_critic_forward.1} parent=1 // pred_check
      _
    $region3: #{actor_critic_forward.1} parent=1 // pred_check_branch
      %16 = sbr.rel (0) target = $region5
    $region4: #{actor_critic_forward.1} parent=1 // pred_region
      %18 = vsyncadd [#allocation3], 0
      %s20 = sshll.u32 %s0, 4
      %s21 = int_to_ptr.hbm [resolvable:$true] %s20
      %s22 = sshll.u32 [#allocation2], 4
      %s23 = int_to_ptr.vmem [resolvable:$true] %s22
      %25 = dma.hbm_to_vmem [thread:$0]  %s21, 128, %s23, [#allocation3]
    $region5: #{actor_critic_forward.1} parent=1 // pred_fallthru
      _
    // Predicated region
    $region6: #{actor_critic_forward.1} parent=1 // pred_check
      _
    $region7: #{actor_critic_forward.1} parent=1 // pred_check_branch
      %27 = sbr.rel (0) target = $region9
    $region8: #{actor_critic_forward.1} parent=1 // pred_region
      %29 = vsyncadd [#allocation5], 0
      %s30 = sshll.u32 %s1, 4
      %s31 = int_to_ptr.hbm [resolvable:$true] %s30
      %s32 = sshll.u32 [#allocation4], 4
      %s33 = int_to_ptr.vmem [resolvable:$true] %s32
      %38 = dma.hbm_to_vmem [thread:$0]  %s31, 256, %s33, [#allocation5], 128, 128, 8
    $region9: #{actor_critic_forward.1} parent=1 // pred_fallthru
      _
    // Predicated region
    $region10: #{actor_critic_forward.1} parent=1 // pred_check
      _
    $region11: #{actor_critic_forward.1} parent=1 // pred_check_branch
      %40 = sbr.rel (0) target = $region13
    $region12: #{actor_critic_forward.1} parent=1 // pred_region
      _
    $region13: #{actor_critic_forward.1} parent=1 // pred_fallthru
      _
    // Predicated region
    $region14: #{actor_critic_forward.1} parent=1 // pred_check
      _
    $region15: #{actor_critic_forward.1} parent=1 // pred_check_branch
      %42 = sbr.rel (0) target = $region17
    $region16: #{actor_critic_forward.1} parent=1 // pred_region
      %44 = vsyncadd [#allocation5], 0
      %s45 = sshll.u32 %s3, 4
      %s46 = int_to_ptr.hbm [resolvable:$true] %s45
      %s47 = sshll.u32 [#allocation6], 4
      %s48 = int_to_ptr.vmem [resolvable:$true] %s47
      %53 = dma.hbm_to_vmem [thread:$0]  %s46, 2048, %s48, [#allocation5], 128, 128, 8
    $region17: #{actor_critic_forward.1} parent=1 // pred_fallthru
      _
    // Predicated region
    $region18: #{actor_critic_forward.1} parent=1 // pred_check
      _
    $region19: #{actor_critic_forward.1} parent=1 // pred_check_branch
      %55 = sbr.rel (0) target = $region21
    $region20: #{actor_critic_forward.1} parent=1 // pred_region
      _
    $region21: #{actor_critic_forward.1} parent=1 // pred_fallthru
      _
    // Predicated region
    $region22: #{actor_critic_forward.1} parent=1 // pred_check
      _
    $region23: #{actor_critic_forward.1} parent=1 // pred_check_branch
      %57 = sbr.rel (0) target = $region25
    $region24: #{actor_critic_forward.1} parent=1 // pred_region
      %59 = vsyncadd [#allocation8], 0
      %s60 = sshll.u32 %s5, 4
      %s61 = int_to_ptr.hbm [resolvable:$true] %s60
      %s62 = sshll.u32 [#allocation7], 4
      %s63 = int_to_ptr.vmem [resolvable:$true] %s62
      %68 = dma.hbm_to_vmem [thread:$0]  %s61, 2048, %s63, [#allocation8], 128, 128, 8
    $region25: #{actor_critic_forward.1} parent=1 // pred_fallthru
      _
    // Predicated region
    $region26: #{actor_critic_forward.1} parent=1 // pred_check
      _
    $region27: #{actor_critic_forward.1} parent=1 // pred_check_branch
      %70 = sbr.rel (0) target = $region29
    $region28: #{actor_critic_forward.1} parent=1 // pred_region
      _
    $region29: #{actor_critic_forward.1} parent=1 // pred_fallthru
      _
    // Predicated region
    $region30: #{actor_critic_forward.1} parent=1 // pred_check
      _
    $region31: #{actor_critic_forward.1} parent=1 // pred_check_branch
      %72 = sbr.rel (0) target = $region33
    $region32: #{actor_critic_forward.1} parent=1 // pred_region
      %74 = dma.done [#allocation3], 128
    $region33: #{actor_critic_forward.1} parent=1 // pred_fallthru
      _
    // Predicated region
    $region34: #{actor_critic_forward.1} parent=1 // pred_check
      _
    $region35: #{actor_critic_forward.1} parent=1 // pred_check_branch
      %76 = sbr.rel (0) target = $region37
    $region36: #{actor_critic_forward.1} parent=1 // pred_region
      %78 = dma.done [#allocation5], 256
    $region37: #{actor_critic_forward.1} parent=1 // pred_fallthru
      _
    // Predicated region
    $region38: #{actor_critic_forward.1} parent=1 // pred_check
      _
    $region39: #{actor_critic_forward.1} parent=1 // pred_check_branch
      %80 = sbr.rel (0) target = $region41
    $region40: #{actor_critic_forward.1} parent=1 // pred_region
      %82 = dma.done [#allocation5], 2048
    $region41: #{actor_critic_forward.1} parent=1 // pred_fallthru
      _
    // Predicated region
    $region42: #{actor_critic_forward.1} parent=1 // pred_check
      _
    $region43: #{actor_critic_forward.1} parent=1 // pred_check_branch
      %84 = sbr.rel (0) target = $region45
    $region44: #{actor_critic_forward.1} parent=1 // pred_region
      %86 = dma.done [#allocation8], 2048
    $region45: #{actor_critic_forward.1} parent=1 // pred_fallthru
      _
    %v87 = vld [vmem:[#allocation2] sm:$0xff]
    %v88 = vld [vmem:[#allocation4] sm:$0xff]
    %v89 = vld [vmem:[#allocation4 + $0x8] sm:$0xff]
    %v90 = vld [vmem:[%s2] sm:$0x1]
    %v92 = vperm.slane %v90, 0
    %vm94 = vcmask 130048
    %v96 = vsel %vm94, %v87, 0
    %98 = vmatpush.msra.mxu0 0.0
    %99 = vmatpush.msra.mxu0 0.0
    %100 = vmatpush.msra.mxu0 0.0
    %101 = vmatpush.msra.mxu0 0.0
    %102 = vmatpush.msra.mxu0 0.0
    %103 = vmatpush.msra.mxu0 0.0
    %104 = vmatpush.msra.mxu0 0.0
    %105 = vmatpush.msra.mxu0 0.0
    %106 = vmatpush.msra.mxu0 0.0
    %107 = vmatpush.msra.mxu0 0.0
    %108 = vmatpush.msra.mxu0 0.0
    %109 = vmatpush.msra.mxu0 0.0
    %110 = vmatpush.msra.mxu0 0.0
    %111 = vmatpush.msra.mxu0 0.0
    %112 = vmatpush.msra.mxu0 %v89
    %113 = vmatpush.msra.mxu0 %v88
    %114 = vmatmul.f32.gmra.mxu0 %v96
    %v115 = vpop.f32.mrf.mxu0
    %v116 = vadd.f32 %v92, %v115
    %117 = vdwg.mxu0
    %v118 = vmax.f32 %v116, 0.0
    %v119 = vld [vmem:[#allocation6] sm:$0xff]
    %v120 = vld [vmem:[#allocation6 + $0x8] sm:$0xff]
    %v121 = vld [vmem:[#allocation6 + $0x10] sm:$0xff]
    %v122 = vld [vmem:[#allocation6 + $0x18] sm:$0xff]
    %v123 = vld [vmem:[#allocation6 + $0x20] sm:$0xff]
    %v124 = vld [vmem:[#allocation6 + $0x28] sm:$0xff]
    %v125 = vld [vmem:[#allocation6 + $0x30] sm:$0xff]
    %v126 = vld [vmem:[#allocation6 + $0x38] sm:$0xff]
    %v127 = vld [vmem:[#allocation6 + $0x40] sm:$0xff]
    %v128 = vld [vmem:[#allocation6 + $0x48] sm:$0xff]
    %v129 = vld [vmem:[#allocation6 + $0x50] sm:$0xff]
    %v130 = vld [vmem:[#allocation6 + $0x58] sm:$0xff]
    %v131 = vld [vmem:[#allocation6 + $0x60] sm:$0xff]
    %v132 = vld [vmem:[#allocation6 + $0x68] sm:$0xff]
    %v133 = vld [vmem:[#allocation6 + $0x70] sm:$0xff]
    %v134 = vld [vmem:[#allocation6 + $0x78] sm:$0xff]
    %v135 = vld [vmem:[%s4] sm:$0x1]
    %v137 = vperm.slane %v135, 0
    %139 = vmatpush.msra.mxu0 %v134
    %140 = vmatpush.msra.mxu0 %v133
    %141 = vmatpush.msra.mxu0 %v132
    %142 = vmatpush.msra.mxu0 %v131
    %143 = vmatpush.msra.mxu0 %v130
    %144 = vmatpush.msra.mxu0 %v129
    %145 = vmatpush.msra.mxu0 %v128
    %146 = vmatpush.msra.mxu0 %v127
    %147 = vmatpush.msra.mxu0 %v126
    %148 = vmatpush.msra.mxu0 %v125
    %149 = vmatpush.msra.mxu0 %v124
    %150 = vmatpush.msra.mxu0 %v123
    %151 = vmatpush.msra.mxu0 %v122
    %152 = vmatpush.msra.mxu0 %v121
    %153 = vmatpush.msra.mxu0 %v120
    %154 = vmatpush.msra.mxu0 %v119
    %155 = vmatmul.f32.gmra.mxu0 %v118
    %v156 = vpop.f32.mrf.mxu0
    %v157 = vadd.f32 %v137, %v156
    %158 = vdwg.mxu0
    %v159 = vmax.f32 %v157, 0.0
    %v160 = vld [vmem:[#allocation7] sm:$0xff]
    %v161 = vld [vmem:[#allocation7 + $0x8] sm:$0xff]
    %v162 = vld [vmem:[#allocation7 + $0x10] sm:$0xff]
    %v163 = vld [vmem:[#allocation7 + $0x18] sm:$0xff]
    %v164 = vld [vmem:[#allocation7 + $0x20] sm:$0xff]
    %v165 = vld [vmem:[#allocation7 + $0x28] sm:$0xff]
    %v166 = vld [vmem:[#allocation7 + $0x30] sm:$0xff]
    %v167 = vld [vmem:[#allocation7 + $0x38] sm:$0xff]
    %v168 = vld [vmem:[#allocation7 + $0x40] sm:$0xff]
    %v169 = vld [vmem:[#allocation7 + $0x48] sm:$0xff]
    %v170 = vld [vmem:[#allocation7 + $0x50] sm:$0xff]
    %v171 = vld [vmem:[#allocation7 + $0x58] sm:$0xff]
    %v172 = vld [vmem:[#allocation7 + $0x60] sm:$0xff]
    %v173 = vld [vmem:[#allocation7 + $0x68] sm:$0xff]
    %v174 = vld [vmem:[#allocation7 + $0x70] sm:$0xff]
    %v175 = vld [vmem:[#allocation7 + $0x78] sm:$0xff]
    %v176 = vld [vmem:[%s6] sm:$0x1]
    %v178 = vperm.slane %v176, 0
    %180 = vmatpush.msra.mxu0 %v175
    %181 = vmatpush.msra.mxu0 %v174
    %182 = vmatpush.msra.mxu0 %v173
    %183 = vmatpush.msra.mxu0 %v172
    %184 = vmatpush.msra.mxu0 %v171
    %185 = vmatpush.msra.mxu0 %v170
    %186 = vmatpush.msra.mxu0 %v169
    %187 = vmatpush.msra.mxu0 %v168
    %188 = vmatpush.msra.mxu0 %v167
    %189 = vmatpush.msra.mxu0 %v166
    %190 = vmatpush.msra.mxu0 %v165
    %191 = vmatpush.msra.mxu0 %v164
    %192 = vmatpush.msra.mxu0 %v163
    %193 = vmatpush.msra.mxu0 %v162
    %194 = vmatpush.msra.mxu0 %v161
    %195 = vmatpush.msra.mxu0 %v160
    %196 = vmatmul.f32.gmra.mxu0 %v159
    %v197 = vpop.f32.mrf.mxu0
    %v198 = vadd.f32 %v178, %v197
    %199 = vdwg.mxu0
    %200 = vst [vmem:[%s7] sm:$0xff] %v198
    // Predicated region
    $region46: #{actor_critic_forward.1} parent=1 // pred_check
      _
    $region47: #{actor_critic_forward.1} parent=1 // pred_check_branch
      %202 = sbr.rel (0) target = $region49
    $region48: #{actor_critic_forward.1} parent=1 // pred_region
      _
    $region49: #{actor_critic_forward.1} parent=1 // pred_fallthru
      _
    // Predicated region
    $region50: #{actor_critic_forward.1} parent=1 // pred_check
      _
    $region51: #{actor_critic_forward.1} parent=1 // pred_check_branch
      %204 = sbr.rel (0) target = $region53
    $region52: #{actor_critic_forward.1} parent=1 // pred_region
      _
    $region53: #{actor_critic_forward.1} parent=1 // pred_fallthru
      _
    %205 = vsyncpa [#allocation3], 1
    %206 = vsyncpa [#allocation5], 1
    %207 = vsyncpa [#allocation8], 1

</llo_original>
